<compile_context>
chip_gen: v7x
topology: tpu7x:2x2x1
jax: 0.10.0
libtpu: 0.0.40
codegen_flags: <defaults>
</compile_context>

<pallas_src>
import numpy as np
import jax
import jax.numpy as jnp
from jax import lax
from jax.experimental import pallas as pl
from jax.experimental.pallas import tpu as pltpu

BN_EPS = 1e-5   # torch BatchNorm1d default eps
L1_EPS = 1e-8   # l1norm eps


def _cdiv(a, b):
    return -(-a // b)


def _pad_up(a, m):
    return _cdiv(a, m) * m


# ---------------------------------------------------------------------------
# Tiling / VMEM plan
# ---------------------------------------------------------------------------
def _plan(B, L, D, x_isz, o_isz):
    try:
        physical = int(pltpu.get_tpu_info().vmem_capacity_bytes)
    except Exception:
        physical = 64 * 1024 * 1024                     # v7x per-core VMEM (smallest)
    vmem_limit = int(min((physical * 3) // 4, 100 * 1024 * 1024))
    budget = (vmem_limit * 9) // 10                     # headroom for compiler scratch

    Dp = _pad_up(D, 128)
    L8 = _pad_up(L, 8)
    Lp = _pad_up(L, 128)

    def need(tb, resident):
        nb = _cdiv(B, tb)
        b_pad = tb * nb
        n = 2 * tb * L8 * Dp * x_isz                    # double-buffered x tiles
        n += 2 * _pad_up(tb, 8) * Dp * o_isz            # double-buffered out tiles
        n += _pad_up(b_pad, 8) * Lp * 4                 # (B_pad, L) f32 score scratch
        n += 2 * 8 * Dp * 4                             # w block
        if resident:
            n += b_pad * L8 * Dp * x_isz                # resident copy of sim_emb
        return n

    if B <= 8:
        TB = B
    else:
        B8 = _pad_up(B, 8)
        TB = _pad_up(_cdiv(B8, 8), 8)                   # aim for ~8 pipelined steps
        min_tile = 1 << 20                              # ...but keep tiles >= ~1 MiB
        while TB * L * D * x_isz < min_tile and _cdiv(B8, 2 * TB) >= 2:
            TB *= 2
        while TB > 8 and need(TB, False) > budget:      # never overflow VMEM
            TB = _pad_up(TB // 2, 8)
    NB = _cdiv(B, TB)
    resident = need(TB, True) <= budget
    return TB, NB, resident, vmem_limit


# ---------------------------------------------------------------------------
# Fused kernel
# ---------------------------------------------------------------------------
def _make_kernel(TB, L, D, count, resident):
    inv_count = 1.0 / float(count)

    def kernel(params_ref, x_ref, w_ref, o_ref, s_all_ref, stat_ref, *rest):
        x_all_ref = rest[0] if resident else None
        p = pl.program_id(0)
        i = pl.program_id(1)
        row0 = pl.multiple_of(i * TB, TB)

        # ---- phase 0: score projection (VPU mul + lane reduce), stash scores ----
        @pl.when(p == 0)
        def _():
            x = x_ref[...]                                          # (TB, L, D)
            if resident:
                x_all_ref[pl.ds(row0, TB), :, :] = x                # keep sim_emb on-chip
            w = w_ref[...].reshape(1, 1, D).astype(x.dtype)         # (1,1,D), no broadcast_to
            s = jnp.sum((x * w).astype(jnp.float32), axis=-1)       # (TB, L) f32 raw scores
            s_all_ref[pl.ds(row0, TB), :] = s

        # ---- phase 1: global BN affine, ReLU, L1 attention, MXU aggregation ----
        @pl.when(p == 1)
        def _():
            @pl.when(i == 0)
            def _():
                # Training-mode BatchNorm1d(1): biased stats over all B*L scores.
                # Zero-padded batch rows contribute exact zeros; divide by the
                # true element count.  The Linear bias cancels exactly.
                s_all = s_all_ref[...]
                mean = jnp.sum(s_all) * inv_count
                var = jnp.maximum(
                    jnp.sum(s_all * s_all) * inv_count - mean * mean, 0.0)
                scale = params_ref[0] * lax.rsqrt(var + BN_EPS)     # gamma * rsqrt(var+eps)
                stat_ref[0] = scale
                stat_ref[1] = params_ref[1] - mean * scale          # beta - mean*scale

            scale = stat_ref[0]
            shift = stat_ref[1]
            s = s_all_ref[pl.ds(row0, TB), :]                       # (TB, L) f32
            y = jnp.maximum(s * scale + shift, 0.0)                 # BN affine + ReLU
            denom = jnp.sum(y, axis=-1, keepdims=True) + L1_EPS     # y >= 0 -> no abs
            attn = y * pl.reciprocal(denom, approx=True)            # (TB, L), EUP recip

            xx = x_all_ref[pl.ds(row0, TB), :, :] if resident else x_ref[...]
            out = lax.dot_general(                                  # batched (1,L)@(L,D) on MXU
                attn.reshape(TB, 1, L).astype(xx.dtype), xx,
                dimension_numbers=(((2,), (1,)), ((0,), (0,))),
                preferred_element_type=jnp.float32)                 # (TB, 1, D) f32
            o_ref[...] = out.reshape(TB, D).astype(o_ref.dtype)     # dense (TB, D) store

    return kernel


# ---------------------------------------------------------------------------
# Wrapper
# ---------------------------------------------------------------------------
def attention_filtration(sim_emb, w, b, gamma, beta, force_resident=None):
    """sim_emb: (B, L, D); w: (1, D); b, gamma, beta: scalars.  Returns (B, D).

    Matches the torch module's forward with BatchNorm1d(1) in training mode
    (batch statistics over all B*L scores).  The Linear bias `b` cancels
    exactly under training-mode BN, so it is accepted but unused.
    """
    assert sim_emb.ndim == 3
    B, L, D = sim_emb.shape
    x_isz = jnp.dtype(sim_emb.dtype).itemsize

    TB, NB, resident, vmem_limit = _plan(B, L, D, x_isz, x_isz)
    if force_resident is not None:
        resident = bool(force_resident)
    B_pad = TB * NB

    x = sim_emb
    if B_pad != B:
        # zero rows: their raw scores are exactly 0 -> BN-stat neutral, output sliced off
        x = jnp.pad(sim_emb, ((0, B_pad - B), (0, 0), (0, 0)))
    w = jnp.asarray(w, jnp.float32).reshape(1, D)
    params = jnp.stack([jnp.asarray(gamma, jnp.float32),
                        jnp.asarray(beta, jnp.float32)])

    if resident:
        # phase 1 index pinned to the last phase-0 block -> no HBM re-read of x
        x_index = lambda p, i: ((1 - p) * i + p * (NB - 1), 0, 0)
    else:
        x_index = lambda p, i: (i, 0, 0)                # phase 1 streams x again

    scratch = [pltpu.VMEM((B_pad, L), jnp.float32),     # raw scores (lane-dense)
               pltpu.SMEM((2,), jnp.float32)]           # BN scale / shift
    if resident:
        scratch.append(pltpu.VMEM((B_pad, L, D), sim_emb.dtype))   # resident sim_emb copy

    out = pl.pallas_call(
        _make_kernel(TB, L, D, B * L, resident),
        out_shape=jax.ShapeDtypeStruct((B_pad, D), sim_emb.dtype),
        grid_spec=pltpu.PrefetchScalarGridSpec(
            num_scalar_prefetch=0,
            grid=(2, NB),                               # (phase, batch tile)
            in_specs=[pl.BlockSpec(memory_space=pltpu.MemorySpace.SMEM),  # [gamma, beta]
                      pl.BlockSpec((TB, L, D), x_index),
                      pl.BlockSpec((1, D), lambda p, i: (0, 0))],
            out_specs=pl.BlockSpec((TB, D), lambda p, i: (p * i, 0)),
            scratch_shapes=scratch),
        compiler_params=pltpu.CompilerParams(
            # Both axes "arbitrary": phase 1 needs BN statistics accumulated
            # over every phase-0 tile, so the batch axis must not be sharded
            # across TensorCores.
            dimension_semantics=("arbitrary", "arbitrary"),
            vmem_limit_bytes=vmem_limit),
        cost_estimate=pl.CostEstimate(
            flops=4 * B_pad * L * D,
            transcendentals=B_pad + 1,
            bytes_accessed=(1 if resident else 2) * B_pad * L * D * x_isz
                           + B_pad * D * x_isz),
    )(params, x, w)

    return out[:B] if B_pad != B else out


# ---------------------------------------------------------------------------
# Pure-JAX reference mirroring the torch forward (training-mode BN)
# ---------------------------------------------------------------------------
def reference(sim_emb, w, b, gamma, beta):
    scores = jnp.einsum("bld,d->bl", sim_emb, w[0]) + b
    mean = jnp.mean(scores)
    var = jnp.mean((scores - mean) ** 2)
    y = (scores - mean) / jnp.sqrt(var + BN_EPS) * gamma + beta
    y = jnp.maximum(y, 0.0)
    attn = y / (jnp.sum(jnp.abs(y), axis=-1, keepdims=True) + L1_EPS)
    return jnp.einsum("bl,bld->bd", attn, sim_emb)


if __name__ == "__main__":
    # (batch, L+1 alignments, sim_dim=128 module default).  B=10 exercises the
    # batch-padding path (B_pad=16, two batch tiles) and multi-tile BN stats.
    B, L, D = 10, 9, 128

    key = jax.random.PRNGKey(0)
    k_x, k_w = jax.random.split(key)

    # Inputs snapped to bf16-representable f32 so the check is insensitive to
    # which f32-matmul strategy the MXU uses (Pallas vs XLA reference).
    sim_emb = jax.random.normal(k_x, (B, L, D), dtype=jnp.float32)
    sim_emb = sim_emb.astype(jnp.bfloat16).astype(jnp.float32)

    # Deterministic parameter init mirroring init_weights():
    #   Linear: uniform(-r, r), r = sqrt(6)/sqrt(in+out), bias = 0
    #   BatchNorm1d(1): weight = 1, bias = 0
    r = float(np.sqrt(6.0) / np.sqrt(D + 1))
    w = jax.random.uniform(k_w, (1, D), minval=-r, maxval=r, dtype=jnp.float32)
    w = w.astype(jnp.bfloat16).astype(jnp.float32)
    b = jnp.float32(0.0)
    gamma = jnp.float32(1.0)
    beta = jnp.float32(0.0)

    ref = reference(sim_emb, w, b, gamma, beta)

    # Run both the VMEM-resident (single HBM read) path and the streaming
    # fallback path.
    for force in (None, False):
        out = attention_filtration(sim_emb, w, b, gamma, beta, force_resident=force)
        out = jax.block_until_ready(out)
        assert out.shape == (B, D), out.shape
        # Tolerance covers MXU f32-precision-mode differences and the EUP
        # approximate reciprocal (structural bugs would be >> 1e-2).
        np.testing.assert_allclose(np.asarray(out), np.asarray(ref),
                                   rtol=2e-2, atol=2e-2)

    print("KERNEL_OK")
</pallas_src>

<mosaic_0001>
module attributes {stable_mosaic.version = 11 : i64} {
  func.func @kernel(%arg0: i32, %arg1: i32, %arg2: memref<2xf32, #tpu.memory_space<smem>>, %arg3: memref<8x9x128xf32, #tpu.memory_space<vmem>>, %arg4: memref<1x128xf32, #tpu.memory_space<vmem>>, %arg5: memref<8x128xf32, #tpu.memory_space<vmem>>, %arg6: memref<16x9xf32, #tpu.memory_space<vmem>>, %arg7: memref<2xf32, #tpu.memory_space<smem>>, %arg8: memref<16x9x128xf32, #tpu.memory_space<vmem>>) attributes {dimension_semantics = [#tpu.dimension_semantics<arbitrary>, #tpu.dimension_semantics<arbitrary>], iteration_bounds = array<i64: 2, 2>, scalar_prefetch = 0 : i64, scratch_operands = 3 : i64, tpu.core_type = #tpu.core_type<tc>, window_params = [{transform_indices = @transform_0, window_bounds = array<i64: 2>}, {transform_indices = @transform_1, window_bounds = array<i64: 8, 9, 128>}, {pipeline_mode = #tpu.pipeline_mode<synchronous>, transform_indices = @transform_2, window_bounds = array<i64: 1, 128>}, {transform_indices = @transform_3, window_bounds = array<i64: 8, 128>}]} {
    %c8_i32 = arith.constant 8 : i32
    %0 = arith.muli %arg1, %c8_i32 : i32
    %1 = tpu.assume_multiple %0, 8 : i32
    %c0_i32 = arith.constant 0 : i32
    %2 = arith.cmpi eq, %arg0, %c0_i32 : i32
    %3 = arith.extui %2 : i1 to i32
    %c0_i32_0 = arith.constant 0 : i32
    %4 = arith.cmpi ne, %3, %c0_i32_0 : i32
    scf.if %4 {
      %c0 = arith.constant 0 : index
      %c0_2 = arith.constant 0 : index
      %c0_3 = arith.constant 0 : index
      %8 = vector.load %arg3[%c0, %c0_2, %c0_3] : memref<8x9x128xf32, #tpu.memory_space<vmem>>, vector<8x9x128xf32>
      %9 = arith.index_cast %1 : i32 to index
      %c0_4 = arith.constant 0 : index
      %c0_5 = arith.constant 0 : index
      %10 = vector.load %arg8[%9, %c0_4, %c0_5] : memref<16x9x128xf32, #tpu.memory_space<vmem>>, vector<8x9x128xf32>
      tpu.vector_store %arg8[%9, %c0_4, %c0_5], %8 {strides = array<i32>} : memref<16x9x128xf32, #tpu.memory_space<vmem>>, vector<8x9x128xf32>,
      %c0_6 = arith.constant 0 : index
      %c0_7 = arith.constant 0 : index
      %11 = vector.load %arg4[%c0_6, %c0_7] : memref<1x128xf32, #tpu.memory_space<vmem>>, vector<1x128xf32>
      %12 = vector.shape_cast %11 : vector<1x128xf32> to vector<1x1x128xf32>
      %13 = vector.broadcast %12 : vector<1x1x128xf32> to vector<8x9x128xf32>
      %14 = arith.mulf %8, %13 : vector<8x9x128xf32>
      %cst = arith.constant dense<0.000000e+00> : vector<8x9xf32>
      %15 = vector.multi_reduction <add>, %14, %cst [2] : vector<8x9x128xf32> to vector<8x9xf32>
      %16 = arith.index_cast %1 : i32 to index
      %c0_8 = arith.constant 0 : index
      %17 = vector.load %arg6[%16, %c0_8] : memref<16x9xf32, #tpu.memory_space<vmem>>, vector<8x9xf32>
      tpu.vector_store %arg6[%16, %c0_8], %15 {strides = array<i32>} : memref<16x9xf32, #tpu.memory_space<vmem>>, vector<8x9xf32>,
    } else {
    }
    %c1_i32 = arith.constant 1 : i32
    %5 = arith.cmpi eq, %arg0, %c1_i32 : i32
    %6 = arith.extui %5 : i1 to i32
    %c0_i32_1 = arith.constant 0 : i32
    %7 = arith.cmpi ne, %6, %c0_i32_1 : i32
    scf.if %7 {
      %c0_i32_2 = arith.constant 0 : i32
      %8 = arith.cmpi eq, %arg1, %c0_i32_2 : i32
      %9 = arith.extui %8 : i1 to i32
      %c0_i32_3 = arith.constant 0 : i32
      %10 = arith.cmpi ne, %9, %c0_i32_3 : i32
      scf.if %10 {
        %c0_12 = arith.constant 0 : index
        %c0_13 = arith.constant 0 : index
        %34 = vector.load %arg6[%c0_12, %c0_13] : memref<16x9xf32, #tpu.memory_space<vmem>>, vector<16x9xf32>
        %35 = vector.shape_cast %34 : vector<16x9xf32> to vector<1x16x9xf32>
        %cst_14 = arith.constant dense<0.000000e+00> : vector<1xf32>
        %36 = vector.multi_reduction <add>, %35, %cst_14 [1, 2] : vector<1x16x9xf32> to vector<1xf32>
        %37 = vector.shape_cast %36 : vector<1xf32> to vector<1x1x1xf32>
        %38 = vector.extract %37[0, 0, 0] : f32 from vector<1x1x1xf32>
        %cst_15 = arith.constant 0.0111111114 : f32
        %39 = arith.mulf %38, %cst_15 : f32
        %40 = arith.mulf %34, %34 : vector<16x9xf32>
        %41 = vector.shape_cast %40 : vector<16x9xf32> to vector<1x16x9xf32>
        %cst_16 = arith.constant dense<0.000000e+00> : vector<1xf32>
        %42 = vector.multi_reduction <add>, %41, %cst_16 [1, 2] : vector<1x16x9xf32> to vector<1xf32>
        %43 = vector.shape_cast %42 : vector<1xf32> to vector<1x1x1xf32>
        %44 = vector.extract %43[0, 0, 0] : f32 from vector<1x1x1xf32>
        %cst_17 = arith.constant 0.0111111114 : f32
        %45 = arith.mulf %44, %cst_17 : f32
        %46 = arith.mulf %39, %39 : f32
        %47 = arith.subf %45, %46 : f32
        %cst_18 = arith.constant 0.000000e+00 : f32
        %48 = arith.maximumf %47, %cst_18 : f32
        %c0_19 = arith.constant 0 : index
        %49 = memref.load %arg2[%c0_19] : memref<2xf32, #tpu.memory_space<smem>>
        %cst_20 = arith.constant 9.99999974E-6 : f32
        %50 = arith.addf %48, %cst_20 : f32
        %51 = math.rsqrt %50 : f32
        %52 = arith.mulf %49, %51 : f32
        %c0_21 = arith.constant 0 : index
        %53 = memref.load %arg7[%c0_21] : memref<2xf32, #tpu.memory_space<smem>>
        memref.store %52, %arg7[%c0_21] : memref<2xf32, #tpu.memory_space<smem>>
        %c1_22 = arith.constant 1 : index
        %54 = memref.load %arg2[%c1_22] : memref<2xf32, #tpu.memory_space<smem>>
        %55 = arith.mulf %39, %52 : f32
        %56 = arith.subf %54, %55 : f32
        %c1_23 = arith.constant 1 : index
        %57 = memref.load %arg7[%c1_23] : memref<2xf32, #tpu.memory_space<smem>>
        memref.store %56, %arg7[%c1_23] : memref<2xf32, #tpu.memory_space<smem>>
      } else {
      }
      %c0 = arith.constant 0 : index
      %11 = memref.load %arg7[%c0] : memref<2xf32, #tpu.memory_space<smem>>
      %c1 = arith.constant 1 : index
      %12 = memref.load %arg7[%c1] : memref<2xf32, #tpu.memory_space<smem>>
      %13 = arith.index_cast %1 : i32 to index
      %c0_4 = arith.constant 0 : index
      %14 = vector.load %arg6[%13, %c0_4] : memref<16x9xf32, #tpu.memory_space<vmem>>, vector<8x9xf32>
      %15 = vector.broadcast %11 : f32 to vector<8x9xf32>
      %16 = arith.mulf %14, %15 : vector<8x9xf32>
      %17 = vector.broadcast %12 : f32 to vector<8x9xf32>
      %18 = arith.addf %16, %17 : vector<8x9xf32>
      %cst = arith.constant 0.000000e+00 : f32
      %19 = vector.broadcast %cst : f32 to vector<8x9xf32>
      %20 = arith.maximumf %18, %19 : vector<8x9xf32>
      %cst_5 = arith.constant dense<0.000000e+00> : vector<8xf32>
      %21 = vector.multi_reduction <add>, %20, %cst_5 [1] : vector<8x9xf32> to vector<8xf32>
      %22 = vector.shape_cast %21 : vector<8xf32> to vector<8x1xf32>
      %cst_6 = arith.constant 9.99999993E-9 : f32
      %23 = vector.broadcast %cst_6 : f32 to vector<8x1xf32>
      %24 = arith.addf %22, %23 : vector<8x1xf32>
      %25 = tpu.reciprocal %24 {approx = true} : vector<8x1xf32> -> vector<8x1xf32>
      %26 = vector.broadcast %25 : vector<8x1xf32> to vector<8x9xf32>
      %27 = arith.mulf %20, %26 : vector<8x9xf32>
      %28 = arith.index_cast %1 : i32 to index
      %c0_7 = arith.constant 0 : index
      %c0_8 = arith.constant 0 : index
      %29 = vector.load %arg8[%28, %c0_7, %c0_8] : memref<16x9x128xf32, #tpu.memory_space<vmem>>, vector<8x9x128xf32>
      %30 = vector.shape_cast %27 : vector<8x9xf32> to vector<8x1x9xf32>
      %cst_9 = arith.constant dense<0.000000e+00> : vector<8x1x128xf32>
      %31 = tpu.matmul %30, %29, %cst_9 {dimension_numbers = #tpu.dot_dimension_numbers<[2], [1], [1], [2], [0, 0, 0, 1, 1, 2], [0], [0]>} : vector<8x1x9xf32>, vector<8x9x128xf32>, vector<8x1x128xf32> -> vector<8x1x128xf32>
      %32 = vector.shape_cast %31 : vector<8x1x128xf32> to vector<8x128xf32>
      %c0_10 = arith.constant 0 : index
      %c0_11 = arith.constant 0 : index
      %33 = vector.load %arg5[%c0_10, %c0_11] : memref<8x128xf32, #tpu.memory_space<vmem>>, vector<8x128xf32>
      tpu.vector_store %arg5[%c0_10, %c0_11], %32 {strides = array<i32>} : memref<8x128xf32, #tpu.memory_space<vmem>>, vector<8x128xf32>,
    } else {
    }
    return
  }
  func.func @transform_0(%arg0: i32, %arg1: i32) -> i32 {
    %c0_i32 = arith.constant 0 : i32
    %c0_i32_0 = arith.constant 0 : i32
    return %c0_i32 : i32
  }
  func.func @transform_1(%arg0: i32, %arg1: i32) -> (i32, i32, i32) {
    %c1_i32 = arith.constant 1 : i32
    %0 = arith.subi %c1_i32, %arg0 : i32
    %1 = arith.muli %0, %arg1 : i32
    %c1_i32_0 = arith.constant 1 : i32
    %2 = arith.muli %arg0, %c1_i32_0 : i32
    %3 = arith.addi %1, %2 : i32
    %c0_i32 = arith.constant 0 : i32
    %c0_i32_1 = arith.constant 0 : i32
    %c0_i32_2 = arith.constant 0 : i32
    return %3, %c0_i32, %c0_i32_1 : i32, i32, i32
  }
  func.func @transform_2(%arg0: i32, %arg1: i32) -> (i32, i32) {
    %c0_i32 = arith.constant 0 : i32
    %c0_i32_0 = arith.constant 0 : i32
    %c0_i32_1 = arith.constant 0 : i32
    return %c0_i32, %c0_i32_0 : i32, i32
  }
  func.func @transform_3(%arg0: i32, %arg1: i32) -> (i32, i32) {
    %0 = arith.muli %arg0, %arg1 : i32
    %c0_i32 = arith.constant 0 : i32
    %c0_i32_0 = arith.constant 0 : i32
    return %0, %c0_i32 : i32, i32
  }
}

</mosaic_0001>

<llo_original>
// kernel: tpu_custom_call.1
$region0: #{tpu_custom_call.1}
  #allocation0 [shape = 'u32[]', space=smem, size = 0x4, offset = 0x4, fixed_abs, tag = 'smem constant byte address 0x4 - core index']
  #allocation1 [shape = 'u32[144,128]{1,0:T(1,128)}', space=vmem, size = 0x12000, scoped, tag = 'internal scratch']
  #allocation2 [shape = 'f32[16,9]{1,0:T(8,128)}', space=vmem, size = 0x2000, scoped, tag = 'scratch operand']
  #allocation3 [shape = 'f32[2]{0:T(128)}', space=smem, size = 0x200, scoped, tag = 'scratch operand']
  #allocation4 [shape = 'f32[16,9,128]{2,1,0:T(8,128)}', space=vmem, size = 0x20000, scoped, tag = 'scratch operand']
  %s0 = inlined_call_operand.vmem [shape: f32[2], index: 0, kind: input, shape index: {}]
  %s1 = inlined_call_operand.vmem [shape: f32[16,9,128], index: 1, kind: input, shape index: {}]
  %s2 = inlined_call_operand.vmem [shape: f32[1,128], index: 2, kind: input, shape index: {}]
  %s3 = inlined_call_operand.hbm [shape: f32[16,128], index: 3, kind: output, shape index: {}]
  %s4 = sld [smem:[#allocation0]]
  $region61: #{tpu_custom_call.1} parent=0
    _
  %s6 = ssub.s32 1, %s4
  %s7 = scalar_select 0, %s6, %s4
  $region1: #{tpu_custom_call.1} parent=0
    #allocation5 [shape = 'u8[512]{0}', space=smem, size = 0x200, scoped, tag = 'input window, operand 0, single buffered']
    #allocation6 [shape = 's32[2]{0}', space=sflag, size = 0x8, scoped, tag = 'scoped memory for tpu_custom_call.1']
    #allocation7 [shape = 's32[2]{0}', space=sflag, size = 0x8, scoped, tag = 'scoped memory for tpu_custom_call.1']
    #allocation8 [shape = 'u8[8192]{0}', space=vmem, size = 0x2000, scoped, tag = 'output window, operand 0']
    %8 = vsyncpa [#allocation7], 0
    %9 = vsyncpa [#allocation6], 0
    %s10 = scalar_lea.sflag [#allocation6], 1
    %11 = vsyncpa %s10, 0
    loop: start=0, step=1, limit=6
    $region2: #{tpu_custom_call.1} parent=1 // loop_pre_header
      _
    $region3: #{tpu_custom_call.1} parent=1 // loop_header
      %s13 = sphi 0, %s17
      %p14 = scmp.ge.s32.totalorder %s13, 6
      %s20 = sphi 0, %s32
      %s21 = sphi 0, %s28
      %s22 = sphi 0, %s20
      %s23 = sphi 0, %s21
      %s24 = sphi 0, %s22
      %s25 = sphi 0, %s23
      %s33 = sphi 0, %s33
      %s35 = sphi 0, %s33
      %s36 = sphi 0, %s35
      %s50 = sphi 0, %s36
      %s62 = sphi 0, %s64
      %s65 = sphi 0, %s62
      %s66 = sphi 0, %s65
      %s82 = sphi 0, %s66
      %s86 = sphi 0, %s86
      %s88 = sphi 0, %s86
      %s89 = sphi 0, %s88
      %s103 = sphi 0, %s89
      %s111 = sphi 0, %s113
      %s114 = sphi 0, %s111
      %s115 = sphi 0, %s114
      %s131 = sphi 0, %s115
    $region4: #{tpu_custom_call.1} parent=1 // loop_header_branch
      %16 = sbr.rel (%p14) target = $region8
    $region5: #{tpu_custom_call.1} parent=1 // loop_body
      %s18 = ssub.s32 %s13, 1
      %s19 = ssub.s32 %s13, 2
      %s26 = sadd.s32 1, %s21
      %p27 = scmp.ge.s32.totalorder %s26, 2
      %s28 = scalar_select %p27, 0, %s26
      %s29 = sadd.s32 1, %s20
      %s30 = scalar_select %p27, %s29, %s20
      %p31 = scmp.ge.s32.totalorder %s30, 2
      %s32 = scalar_select %p31, 0, %s30
      %s34 = sadd.s32 %s33, 1
      %p37 = scmp.eq.s32.totalorder %s13, 3
      %p38 = scmp.ne.s32.totalorder %s33, %s35
      %p39 = scmp.eq.s32.totalorder %s13, 0
      %p40 = por %p38, %p39
      %p41 = scmp.ne.s32.totalorder %s33, %s35
      %p42 = scmp.eq.s32.totalorder %s18, 3
      %p43 = por %p41, %p42
      %p44 = scmp.ne.s32.totalorder %s35, %s36
      %p45 = scmp.eq.s32.totalorder %s18, 0
      %p46 = por %p44, %p45
      %p47 = scmp.ne.s32.totalorder %s35, %s36
      %p48 = scmp.eq.s32.totalorder %s19, 3
      %p49 = por %p47, %p48
      %p51 = scmp.ne.s32.totalorder %s36, %s50
      %p52 = scmp.eq.s32.totalorder %s19, 0
      %p53 = por %p51, %p52
      %s54 = ssub.s32 1, %s20
      %s55 = smul.u32 %s54, %s21
      %s56 = sadd.s32 %s55, %s20
      %s57 = ssub.s32 1, %s32
      %s58 = smul.u32 %s57, %s28
      %s59 = sadd.s32 %s58, %s32
      %s60 = ssub.s32 %s56, %s59
      %p61 = scmp.eq.s32.totalorder %s60, 0
      %s63 = sadd.s32 %s62, 1
      %s64 = scalar_select %p61, %s62, %s63
      %p67 = pneg %p61
      %p68 = scmp.eq.s32.totalorder %s13, 3
      %p69 = por %p67, %p68
      %p70 = scmp.ne.s32.totalorder %s62, %s65
      %p71 = scmp.eq.s32.totalorder %s13, 0
      %p72 = por %p70, %p71
      %p73 = scmp.ne.s32.totalorder %s62, %s65
      %p74 = scmp.eq.s32.totalorder %s18, 3
      %p75 = por %p73, %p74
      %p76 = scmp.ne.s32.totalorder %s65, %s66
      %p77 = scmp.eq.s32.totalorder %s18, 0
      %p78 = por %p76, %p77
      %p79 = scmp.ne.s32.totalorder %s65, %s66
      %p80 = scmp.eq.s32.totalorder %s19, 3
      %p81 = por %p79, %p80
      %p83 = scmp.ne.s32.totalorder %s66, %s82
      %p84 = scmp.eq.s32.totalorder %s19, 0
      %p85 = por %p83, %p84
      %s87 = sadd.s32 %s86, 1
      %p90 = scmp.eq.s32.totalorder %s13, 3
      %p91 = scmp.ne.s32.totalorder %s86, %s88
      %p92 = scmp.eq.s32.totalorder %s13, 0
      %p93 = por %p91, %p92
      %p94 = scmp.ne.s32.totalorder %s86, %s88
      %p95 = scmp.eq.s32.totalorder %s18, 3
      %p96 = por %p94, %p95
      %p97 = scmp.ne.s32.totalorder %s88, %s89
      %p98 = scmp.eq.s32.totalorder %s18, 0
      %p99 = por %p97, %p98
      %p100 = scmp.ne.s32.totalorder %s88, %s89
      %p101 = scmp.eq.s32.totalorder %s19, 3
      %p102 = por %p100, %p101
      %p104 = scmp.ne.s32.totalorder %s89, %s103
      %p105 = scmp.eq.s32.totalorder %s19, 0
      %p106 = por %p104, %p105
      %s107 = smul.u32 %s20, %s21
      %s108 = smul.u32 %s32, %s28
      %s109 = ssub.s32 %s107, %s108
      %p110 = scmp.eq.s32.totalorder %s109, 0
      %s112 = sadd.s32 %s111, 1
      %s113 = scalar_select %p110, %s111, %s112
      %p116 = pneg %p110
      %p117 = scmp.eq.s32.totalorder %s13, 3
      %p118 = por %p116, %p117
      %p119 = scmp.ne.s32.totalorder %s111, %s114
      %p120 = scmp.eq.s32.totalorder %s13, 0
      %p121 = por %p119, %p120
      %p122 = scmp.ne.s32.totalorder %s111, %s114
      %p123 = scmp.eq.s32.totalorder %s18, 3
      %p124 = por %p122, %p123
      %p125 = scmp.ne.s32.totalorder %s114, %s115
      %p126 = scmp.eq.s32.totalorder %s18, 0
      %p127 = por %p125, %p126
      %p128 = scmp.ne.s32.totalorder %s114, %s115
      %p129 = scmp.eq.s32.totalorder %s19, 3
      %p130 = por %p128, %p129
      %p132 = scmp.ne.s32.totalorder %s115, %s131
      %p133 = scmp.eq.s32.totalorder %s19, 0
      %p134 = por %p132, %p133
      %p135 = scmp.le.s32.totalorder 1, %s13
      %p136 = scmp.lt.s32.totalorder %s13, 5
      %p137 = pnand %p135, %p136
      %p138 = pneg %p137
      // Predicated region
      $region9: #{tpu_custom_call.1} parent=5 // pred_check
        _
      $region10: #{tpu_custom_call.1} parent=5 // pred_check_branch
        %140 = sbr.rel (%p137) target = $region12
      $region11: #{tpu_custom_call.1} parent=5 // pred_region
        %s141 = ssub.s32 %s13, 1
        // Predicated region
        $region13: #{tpu_custom_call.1} parent=11 // pred_check
          %p142 = pneg %p46
        $region14: #{tpu_custom_call.1} parent=11 // pred_check_branch
          %144 = sbr.rel (%p142) target = $region16
        $region15: #{tpu_custom_call.1} parent=11 // pred_region
          %s146 = ssub.s32 16, 16
          %147 = vsyncadd [#allocation7], %s146
          %s149 = sshll.u32 %s0, 4
          %s150 = int_to_ptr.vmem [resolvable:$true] %s149
          %152 = dma.vmem_to_smem %s150, 16, [#allocation5], [#allocation7]
        $region16: #{tpu_custom_call.1} parent=11 // pred_fallthru
          _
        // Predicated region
        $region17: #{tpu_custom_call.1} parent=11 // pred_check
          %p153 = pneg %p99
        $region18: #{tpu_custom_call.1} parent=11 // pred_check_branch
          %155 = sbr.rel (%p153) target = $region20
        $region19: #{tpu_custom_call.1} parent=11 // pred_region
          _
        $region20: #{tpu_custom_call.1} parent=11 // pred_fallthru
          _
      $region12: #{tpu_custom_call.1} parent=5 // pred_fallthru
        _
      %p156 = scmp.lt.s32.totalorder %s13, 4
      // Predicated region
      $region21: #{tpu_custom_call.1} parent=5 // pred_check
        %p157 = pneg %p156
      $region22: #{tpu_custom_call.1} parent=5 // pred_check_branch
        %159 = sbr.rel (%p157) target = $region24
      $region23: #{tpu_custom_call.1} parent=5 // pred_region
        // Predicated region
        $region25: #{tpu_custom_call.1} parent=23 // pred_check
          %p160 = pneg %p72
        $region26: #{tpu_custom_call.1} parent=23 // pred_check_branch
          %162 = sbr.rel (%p160) target = $region28
        $region27: #{tpu_custom_call.1} parent=23 // pred_region
          %s163 = ssub.s32 1, %s20
          %s164 = smul.u32 %s163, %s21
          %s165 = sadd.s32 %s164, %s20
          %s166 = smul.u32 8, %s165
          %p167 = scmp.lt.s32.totalorder %s166, 15
          %s168 = scalar_select %p167, %s166, 15
          %s169 = smul.addr %s168, 2
          %s170 = smul.addr %s169, 8
          %s171 = scalar_lea.vmem %s1, %s170
          %s172 = ssub.s32 1, %s20
          %s173 = smul.u32 %s172, %s21
          %s174 = sadd.s32 %s173, %s20
          %s175 = smul.u32 8, %s174
        $region28: #{tpu_custom_call.1} parent=23 // pred_fallthru
          _
      $region24: #{tpu_custom_call.1} parent=5 // pred_fallthru
        _
      %p176 = scmp.le.s32.totalorder 1, %s13
      %p177 = scmp.lt.s32.totalorder %s13, 5
      %p178 = pnand %p176, %p177
      %p179 = pneg %p178
      // Predicated region
      $region29: #{tpu_custom_call.1} parent=5 // pred_check
        _
      $region30: #{tpu_custom_call.1} parent=5 // pred_check_branch
        %181 = sbr.rel (%p178) target = $region32
      $region31: #{tpu_custom_call.1} parent=5 // pred_region
        %s182 = ssub.s32 %s13, 1
        // Predicated region
        $region33: #{tpu_custom_call.1} parent=31 // pred_check
          %p183 = pneg %p46
        $region34: #{tpu_custom_call.1} parent=31 // pred_check_branch
          %185 = sbr.rel (%p183) target = $region36
        $region35: #{tpu_custom_call.1} parent=31 // pred_region
          %186 = dma.done [#allocation7], 16
        $region36: #{tpu_custom_call.1} parent=31 // pred_fallthru
          _
        %187 = sfence
        %p188 = pneg %p46
        %p189 = pneg %p43
        %s190 = ssub.s32 1, %s22
        %s191 = smul.u32 %s190, %s23
        %s192 = sadd.s32 %s191, %s22
        %s193 = smul.u32 8, %s192
        %p194 = scmp.lt.s32.totalorder %s193, 15
        %s195 = scalar_select %p194, %s193, 15
        %s196 = smul.addr %s195, 2
        %s197 = smul.addr %s196, 8
        %s198 = scalar_lea.vmem %s1, %s197
        %p199 = pneg %p78
        %p200 = pneg %p75
        %p201 = pneg %p99
        %p202 = pneg %p96
        %p203 = pneg %p127
        %p204 = pneg %p124
        %s205 = sand.u32 %s114, 1
        %s206 = scalar_lea.sflag [#allocation6], %s205
        %s207 = sand.u32 %s114, 1
        %s208 = smul.addr %s207, 8
        %s209 = scalar_lea.vmem [#allocation8], %s208
        %s210 = ssub.s32 1, %s22
        %s211 = smul.u32 %s210, %s23
        %s212 = sadd.s32 %s211, %s22
        %s213 = smul.u32 8, %s212
        %p214 = scmp.lt.s32.totalorder %s213, 15
        %s215 = scalar_select %p214, %s213, 15
        %s216 = smul.addr %s215, 2
        %s217 = smul.addr %s216, 8
        %s218 = scalar_lea.vmem %s1, %s217
        %s219 = ssub.s32 1, %s22
        %s220 = smul.u32 %s219, %s23
        %s221 = sadd.s32 %s220, %s22
        %s222 = smul.u32 8, %s221
        %s223 = smul.u32 %s22, %s23
        %s224 = smul.u32 %s23, 8
        %p225 = scmp.eq.s32.totalorder %s22, 0
        // Predicated region
        $region37: #{tpu_custom_call.1} parent=31 // pred_check
          %p226 = pneg %p225
        $region38: #{tpu_custom_call.1} parent=31 // pred_check_branch
          %228 = sbr.rel (%p226) target = $region40
        $region39: #{tpu_custom_call.1} parent=31 // pred_region
          %v229 = vld [vmem:[%s218] sm:$0xff]
          %v230 = vld [vmem:[%s218 + $0x8] sm:$0x1]
          %v231 = vld [vmem:[%s218 + $0x10] sm:$0xff]
          %v232 = vld [vmem:[%s218 + $0x18] sm:$0x1]
          %v233 = vld [vmem:[%s218 + $0x20] sm:$0xff]
          %v234 = vld [vmem:[%s218 + $0x28] sm:$0x1]
          %v235 = vld [vmem:[%s218 + $0x30] sm:$0xff]
          %v236 = vld [vmem:[%s218 + $0x38] sm:$0x1]
          %v237 = vld [vmem:[%s218 + $0x40] sm:$0xff]
          %v238 = vld [vmem:[%s218 + $0x48] sm:$0x1]
          %v239 = vld [vmem:[%s218 + $0x50] sm:$0xff]
          %v240 = vld [vmem:[%s218 + $0x58] sm:$0x1]
          %v241 = vld [vmem:[%s218 + $0x60] sm:$0xff]
          %v242 = vld [vmem:[%s218 + $0x68] sm:$0x1]
          %v243 = vld [vmem:[%s218 + $0x70] sm:$0xff]
          %v244 = vld [vmem:[%s218 + $0x78] sm:$0x1]
          %s245 = smul.u32 %s224, 16
          %s246 = scalar_lea.vmem [#allocation4], %s245
          %247 = vst [vmem:[%s246] sm:$0xff] %v229
          %248 = vst [vmem:[%s246 + $0x8] sm:$0x1] %v230
          %249 = vst [vmem:[%s246 + $0x10] sm:$0xff] %v231
          %250 = vst [vmem:[%s246 + $0x18] sm:$0x1] %v232
          %251 = vst [vmem:[%s246 + $0x20] sm:$0xff] %v233
          %252 = vst [vmem:[%s246 + $0x28] sm:$0x1] %v234
          %253 = vst [vmem:[%s246 + $0x30] sm:$0xff] %v235
          %254 = vst [vmem:[%s246 + $0x38] sm:$0x1] %v236
          %255 = vst [vmem:[%s246 + $0x40] sm:$0xff] %v237
          %256 = vst [vmem:[%s246 + $0x48] sm:$0x1] %v238
          %257 = vst [vmem:[%s246 + $0x50] sm:$0xff] %v239
          %258 = vst [vmem:[%s246 + $0x58] sm:$0x1] %v240
          %259 = vst [vmem:[%s246 + $0x60] sm:$0xff] %v241
          %260 = vst [vmem:[%s246 + $0x68] sm:$0x1] %v242
          %261 = vst [vmem:[%s246 + $0x70] sm:$0xff] %v243
          %262 = vst [vmem:[%s246 + $0x78] sm:$0x1] %v244
          %v263 = vld [vmem:[%s2] sm:$0x1]
          %v265 = vlaneseq
          %v266 = vshrl.u32 %v265, 7
          %v267 = vsub.s32 0, %v266
          %v268 = vrot.slane %v263, %v267
          %v270 = vmul.f32 %v229, %v268
          %v271 = vmul.f32 %v230, %v268
          %v272 = vmul.f32 %v231, %v268
          %v273 = vmul.f32 %v232, %v268
          %v274 = vmul.f32 %v233, %v268
          %v275 = vmul.f32 %v234, %v268
          %v276 = vmul.f32 %v235, %v268
          %v277 = vmul.f32 %v236, %v268
          %v278 = vmul.f32 %v237, %v268
          %v279 = vmul.f32 %v238, %v268
          %v280 = vmul.f32 %v239, %v268
          %v281 = vmul.f32 %v240, %v268
          %v282 = vmul.f32 %v241, %v268
          %v283 = vmul.f32 %v242, %v268
          %v284 = vmul.f32 %v243, %v268
          %v285 = vmul.f32 %v244, %v268
          %286 = vadd.xlane.f32.xlu0 %v270
          %v287 = vpop.xlane.xlu0 %286
          %vm288 = vcmask 1040384
          %v289 = vsel %vm288, %v271, 0.0
          %290 = vadd.xlane.f32.xlu0 %v289
          %v291 = vpop.xlane.xlu0 %290
          %292 = vadd.xlane.f32.xlu0 %v272
          %v293 = vpop.xlane.xlu0 %292
          %v294 = vsel %vm288, %v273, 0.0
          %295 = vadd.xlane.f32.xlu0 %v294
          %v296 = vpop.xlane.xlu0 %295
          %297 = vadd.xlane.f32.xlu0 %v274
          %v298 = vpop.xlane.xlu0 %297
          %v299 = vsel %vm288, %v275, 0.0
          %300 = vadd.xlane.f32.xlu0 %v299
          %v301 = vpop.xlane.xlu0 %300
          %302 = vadd.xlane.f32.xlu0 %v276
          %v303 = vpop.xlane.xlu0 %302
          %v304 = vsel %vm288, %v277, 0.0
          %305 = vadd.xlane.f32.xlu0 %v304
          %v306 = vpop.xlane.xlu0 %305
          %307 = vadd.xlane.f32.xlu0 %v278
          %v308 = vpop.xlane.xlu0 %307
          %v309 = vsel %vm288, %v279, 0.0
          %310 = vadd.xlane.f32.xlu0 %v309
          %v311 = vpop.xlane.xlu0 %310
          %312 = vadd.xlane.f32.xlu0 %v280
          %v313 = vpop.xlane.xlu0 %312
          %v314 = vsel %vm288, %v281, 0.0
          %315 = vadd.xlane.f32.xlu0 %v314
          %v316 = vpop.xlane.xlu0 %315
          %317 = vadd.xlane.f32.xlu0 %v282
          %v318 = vpop.xlane.xlu0 %317
          %v319 = vsel %vm288, %v283, 0.0
          %320 = vadd.xlane.f32.xlu0 %v319
          %v321 = vpop.xlane.xlu0 %320
          %322 = vadd.xlane.f32.xlu0 %v284
          %v323 = vpop.xlane.xlu0 %322
          %v324 = vsel %vm288, %v285, 0.0
          %325 = vadd.xlane.f32.xlu0 %v324
          %v326 = vpop.xlane.xlu0 %325
          %v343 = vlaneseq
          %v344 = vand.u32 %v343, 127
          %v345 = vlaneseq
          %v346 = vshrl.u32 %v345, 7
          %v347 = vsub.s32 %v344, %v346
          %v348 = vrot.slane %v287, %v347
          %v349 = vadd.s32 %v344, 4294967288
          %v350 = vlaneseq
          %v351 = vshrl.u32 %v350, 7
          %v352 = vsub.s32 %v349, %v351
          %v353 = vrot.slane %v291, %v352
          %vm354 = vcmask 130112
          %v355 = vsel %vm354, %v353, %v348
          %v356 = vlaneseq
          %v357 = vshrl.u32 %v356, 7
          %v358 = vsub.s32 %v344, %v357
          %v359 = vrot.slane %v293, %v358
          %v360 = vlaneseq
          %v361 = vshrl.u32 %v360, 7
          %v362 = vsub.s32 %v349, %v361
          %v363 = vrot.slane %v296, %v362
          %v364 = vsel %vm354, %v363, %v359
          %v365 = vlaneseq
          %v366 = vshrl.u32 %v365, 7
          %v367 = vsub.s32 %v344, %v366
          %v368 = vrot.slane %v298, %v367
          %v369 = vlaneseq
          %v370 = vshrl.u32 %v369, 7
          %v371 = vsub.s32 %v349, %v370
          %v372 = vrot.slane %v301, %v371
          %v373 = vsel %vm354, %v372, %v368
          %v374 = vlaneseq
          %v375 = vshrl.u32 %v374, 7
          %v376 = vsub.s32 %v344, %v375
          %v377 = vrot.slane %v303, %v376
          %v378 = vlaneseq
          %v379 = vshrl.u32 %v378, 7
          %v380 = vsub.s32 %v349, %v379
          %v381 = vrot.slane %v306, %v380
          %v382 = vsel %vm354, %v381, %v377
          %v383 = vlaneseq
          %v384 = vshrl.u32 %v383, 7
          %v385 = vsub.s32 %v344, %v384
          %v386 = vrot.slane %v308, %v385
          %v387 = vlaneseq
          %v388 = vshrl.u32 %v387, 7
          %v389 = vsub.s32 %v349, %v388
          %v390 = vrot.slane %v311, %v389
          %v391 = vsel %vm354, %v390, %v386
          %v392 = vlaneseq
          %v393 = vshrl.u32 %v392, 7
          %v394 = vsub.s32 %v344, %v393
          %v395 = vrot.slane %v313, %v394
          %v396 = vlaneseq
          %v397 = vshrl.u32 %v396, 7
          %v398 = vsub.s32 %v349, %v397
          %v399 = vrot.slane %v316, %v398
          %v400 = vsel %vm354, %v399, %v395
          %v401 = vlaneseq
          %v402 = vshrl.u32 %v401, 7
          %v403 = vsub.s32 %v344, %v402
          %v404 = vrot.slane %v318, %v403
          %v405 = vlaneseq
          %v406 = vshrl.u32 %v405, 7
          %v407 = vsub.s32 %v349, %v406
          %v408 = vrot.slane %v321, %v407
          %v409 = vsel %vm354, %v408, %v404
          %v410 = vlaneseq
          %v411 = vshrl.u32 %v410, 7
          %v412 = vsub.s32 %v344, %v411
          %v413 = vrot.slane %v323, %v412
          %v414 = vlaneseq
          %v415 = vshrl.u32 %v414, 7
          %v416 = vsub.s32 %v349, %v415
          %v417 = vrot.slane %v326, %v416
          %v418 = vsel %vm354, %v417, %v413
          %vm419 = vcmask 1041409
          %v420 = vsel %vm419, %v364, %v355
          %vm421 = vcmask 1042434
          %v422 = vsel %vm421, %v373, %v420
          %vm423 = vcmask 1043459
          %v424 = vsel %vm423, %v382, %v422
          %vm425 = vcmask 1044484
          %v426 = vsel %vm425, %v391, %v424
          %vm427 = vcmask 1045509
          %v428 = vsel %vm427, %v400, %v426
          %vm429 = vcmask 1046534
          %v430 = vsel %vm429, %v409, %v428
          %vm431 = vcmask 1047559
          %v432 = vsel %vm431, %v418, %v430
          %s434 = scalar_lea.vmem [#allocation2], %s224
          %vm435 = vcmask 72704
          %436 = vst.msk [vmem:[%s434] sm:$0xff] %vm435, %v432
        $region40: #{tpu_custom_call.1} parent=31 // pred_fallthru
          _
        %p437 = scmp.eq.s32.totalorder %s22, 1
        // Predicated region
        $region41: #{tpu_custom_call.1} parent=31 // pred_check
          %p438 = pneg %p437
        $region42: #{tpu_custom_call.1} parent=31 // pred_check_branch
          %440 = sbr.rel (%p438) target = $region44
        $region43: #{tpu_custom_call.1} parent=31 // pred_region
          %p441 = scmp.eq.s32.totalorder %s23, 0
          // Predicated region
          $region45: #{tpu_custom_call.1} parent=43 // pred_check
            %p442 = pneg %p441
          $region46: #{tpu_custom_call.1} parent=43 // pred_check_branch
            %444 = sbr.rel (%p442) target = $region48
          $region47: #{tpu_custom_call.1} parent=43 // pred_region
            %v445 = vld [vmem:[#allocation2] sm:$0xff]
            %v446 = vld [vmem:[#allocation2 + $0x8] sm:$0xff]
            %vm447 = vcmask 72704
            %v448 = vsel %vm447, %v445, 0.0
            %v449 = vsel %vm447, %v446, 0.0
            %v450 = vadd.f32 %v448, %v449
            %451 = vadd.xlane.f32.xlu0 %v450
            %v452 = vpop.xlane.xlu0 %451
            %v453 = vrot.slane %v452, 4
            %v454 = vadd.f32 %v452, %v453
            %v455 = vrot.slane %v454, 2
            %v456 = vadd.f32 %v454, %v455
            %v457 = vrot.slane %v456, 1
            %v458 = vadd.f32 %v456, %v457
            %s459 = vtos %v458
            %s460 = smul.f32 %s459, 0.011111111
            %v461 = vmul.f32 %v445, %v445
            %v462 = vmul.f32 %v446, %v446
            %v463 = vsel %vm447, %v461, 0.0
            %v464 = vsel %vm447, %v462, 0.0
            %v465 = vadd.f32 %v463, %v464
            %466 = vadd.xlane.f32.xlu0 %v465
            %v467 = vpop.xlane.xlu0 %466
            %v468 = vrot.slane %v467, 4
            %v469 = vadd.f32 %v467, %v468
            %v470 = vrot.slane %v469, 2
            %v471 = vadd.f32 %v469, %v470
            %v472 = vrot.slane %v471, 1
            %v473 = vadd.f32 %v471, %v472
            %s474 = vtos %v473
            %s475 = smul.f32 %s474, 0.011111111
            %s476 = smul.f32 %s460, %s460
            %s477 = ssub.f32 %s475, %s476
            %s478 = smax.f32 %s477, 0.0
            %s479 = sld [smem:[#allocation5]]
            %s480 = sadd.f32 %s478, 1e-05
            %v481 = vstv %s480
            %v482 = vrsqrt.pop %v481
            %s483 = vtos %v482
            %s484 = smul.f32 %s479, %s483
            %s485 = scalar_lea.smem [#allocation3], 0
            %486 = sst [smem:[%s485]] %s484
            %s487 = sld [smem:[#allocation5 + $0x1]]
            %s488 = smul.f32 %s460, %s484
            %s489 = ssub.f32 %s487, %s488
            %s490 = scalar_lea.smem [#allocation3], 1
            %491 = sst [smem:[%s490]] %s489
          $region48: #{tpu_custom_call.1} parent=43 // pred_fallthru
            _
          %s492 = sld [smem:[#allocation3]]
          %s493 = sld [smem:[#allocation3 + $0x1]]
          %s494 = scalar_lea.vmem [#allocation2], %s224
          %v495 = vld [vmem:[%s494] sm:$0xff]
          %v496 = vstv %s492
          %v497 = vmul.f32 %v495, %v496
          %v498 = vstv %s493
          %v499 = vadd.f32 %v497, %v498
          %v500 = vmax.f32 %v499, 0.0
          %vm501 = vcmask 72704
          %v502 = vsel %vm501, %v500, 0.0
          %503 = vadd.xlane.f32.xlu0 %v502
          %v504 = vpop.xlane.xlu0 %503
          %v505 = vadd.f32 %v504, 1e-08
          %v506 = vrcp.pop %v505
          %v507 = vmul.f32 %v500, %v506
          %s508 = smul.u32 %s224, 16
          %s509 = scalar_lea.vmem [#allocation4], %s508
          %v510 = vld [vmem:[%s509] sm:$0xff]
          %v511 = vld [vmem:[%s509 + $0x8] sm:$0x1]
          %v512 = vld [vmem:[%s509 + $0x10] sm:$0xff]
          %v513 = vld [vmem:[%s509 + $0x18] sm:$0x1]
          %v514 = vld [vmem:[%s509 + $0x20] sm:$0xff]
          %v515 = vld [vmem:[%s509 + $0x28] sm:$0x1]
          %v516 = vld [vmem:[%s509 + $0x30] sm:$0xff]
          %v517 = vld [vmem:[%s509 + $0x38] sm:$0x1]
          %v518 = vld [vmem:[%s509 + $0x40] sm:$0xff]
          %v519 = vld [vmem:[%s509 + $0x48] sm:$0x1]
          %v520 = vld [vmem:[%s509 + $0x50] sm:$0xff]
          %v521 = vld [vmem:[%s509 + $0x58] sm:$0x1]
          %v522 = vld [vmem:[%s509 + $0x60] sm:$0xff]
          %v523 = vld [vmem:[%s509 + $0x68] sm:$0x1]
          %v524 = vld [vmem:[%s509 + $0x70] sm:$0xff]
          %v525 = vld [vmem:[%s509 + $0x78] sm:$0x1]
          %v527 = vcombine.high %v507, %v507
          %v529 = vunpack.c.l.s4 1966171168
          %v530 = vunpack.c.0.s8 %v529
          %v531 = vlaneseq
          %v532 = vshrl.u32 %v531, 7
          %v533 = vsub.s32 %v530, %v532
          %v534 = vrot.slane %v507, %v533
          %v536 = vunpack.c.l.s4 1966171168
          %v537 = vunpack.c.0.s8 %v536
          %v538 = vlaneseq
          %v539 = vshrl.u32 %v538, 7
          %v540 = vsub.s32 %v537, %v539
          %v541 = vrot.slane %v527, %v540
          %v542 = vcombine.high %v534, %v534
          %v543 = vcombine.high %v541, %v541
          %v545 = vunpack.c.l.s4 1966171168
          %v546 = vunpack.c.0.s8 %v545
          %v547 = vlaneseq
          %v548 = vshrl.u32 %v547, 7
          %v549 = vsub.s32 %v546, %v548
          %v550 = vrot.slane %v534, %v549
          %v552 = vunpack.c.l.s4 1966171168
          %v553 = vunpack.c.0.s8 %v552
          %v554 = vlaneseq
          %v555 = vshrl.u32 %v554, 7
          %v556 = vsub.s32 %v553, %v555
          %v557 = vrot.slane %v541, %v556
          %v559 = vunpack.c.l.s4 1966171168
          %v560 = vunpack.c.0.s8 %v559
          %v561 = vlaneseq
          %v562 = vshrl.u32 %v561, 7
          %v563 = vsub.s32 %v560, %v562
          %v564 = vrot.slane %v542, %v563
          %v566 = vunpack.c.l.s4 1966171168
          %v567 = vunpack.c.0.s8 %v566
          %v568 = vlaneseq
          %v569 = vshrl.u32 %v568, 7
          %v570 = vsub.s32 %v567, %v569
          %v571 = vrot.slane %v543, %v570
          %v572 = vcombine.high %v550, %v550
          %v573 = vcombine.high %v557, %v557
          %v574 = vcombine.high %v564, %v564
          %v575 = vcombine.high %v571, %v571
          %v576 = vsel %vm501, %v550, 0
          %vm578 = vcmask 1040384
          %v580 = vsel %vm578, %v511, 0
          %582 = vmatprep.subr.mxu0 0.0
          %583 = vmatpush1.msra.mxu0 %v510
          %584 = vmatprep.subr.mxu0 0.0
          %585 = vmatpush1.msra.mxu0 %v580
          %586 = vmatprep.subr.mxu0 0.0
          %587 = vmatpush1.msra.mxu0 0.0
          %588 = vmatprep.subr.mxu0 0.0
          %589 = vmatpush1.msra.mxu0 0.0
          %590 = vmatprep.subr.mxu0 0.0
          %591 = vmatpush1.msra.mxu0 0.0
          %592 = vmatprep.subr.mxu0 0.0
          %593 = vmatpush1.msra.mxu0 0.0
          %594 = vmatprep.subr.mxu0 0.0
          %595 = vmatpush1.msra.mxu0 0.0
          %596 = vmatprep.subr.mxu0 0.0
          %597 = vmatpush1.msra.mxu0 0.0
          %598 = vmatprep.subr.mxu0 0.0
          %599 = vmatpush1.msra.mxu0 0.0
          %600 = vmatprep.subr.mxu0 0.0
          %601 = vmatpush1.msra.mxu0 0.0
          %602 = vmatprep.subr.mxu0 0.0
          %603 = vmatpush1.msra.mxu0 0.0
          %604 = vmatprep.subr.mxu0 0.0
          %605 = vmatpush1.msra.mxu0 0.0
          %606 = vmatprep.subr.mxu0 0.0
          %607 = vmatpush1.msra.mxu0 0.0
          %608 = vmatprep.subr.mxu0 0.0
          %609 = vmatpush1.msra.mxu0 0.0
          %610 = vmatprep.subr.mxu0 0.0
          %611 = vmatpush1.msra.mxu0 0.0
          %612 = vmatprep.subr.mxu0 0.0
          %613 = vmatpush1.msra.mxu0 0.0
          %614 = vmatprep.subr.mxu0 0.0
          %615 = vmatpush1.msra.mxu0 0.0
          %616 = vmatprep.subr.mxu0 0.0
          %617 = vmatpush1.msra.mxu0 0.0
          %618 = vmatprep.subr.mxu0 0.0
          %619 = vmatpush1.msra.mxu0 0.0
          %620 = vmatprep.subr.mxu0 0.0
          %621 = vmatpush1.msra.mxu0 0.0
          %622 = vmatprep.subr.mxu0 0.0
          %623 = vmatpush1.msra.mxu0 0.0
          %624 = vmatprep.subr.mxu0 0.0
          %625 = vmatpush1.msra.mxu0 0.0
          %626 = vmatprep.subr.mxu0 0.0
          %627 = vmatpush1.msra.mxu0 0.0
          %628 = vmatprep.subr.mxu0 0.0
          %629 = vmatpush1.msra.mxu0 0.0
          %630 = vmatprep.subr.mxu0 0.0
          %631 = vmatpush1.msra.mxu0 0.0
          %632 = vmatprep.subr.mxu0 0.0
          %633 = vmatpush1.msra.mxu0 0.0
          %634 = vmatprep.subr.mxu0 0.0
          %635 = vmatpush1.msra.mxu0 0.0
          %636 = vmatprep.subr.mxu0 0.0
          %637 = vmatpush1.msra.mxu0 0.0
          %638 = vmatprep.subr.mxu0 0.0
          %639 = vmatpush1.msra.mxu0 0.0
          %640 = vmatprep.subr.mxu0 0.0
          %641 = vmatpush1.msra.mxu0 0.0
          %642 = vmatprep.subr.mxu0 0.0
          %643 = vmatpush1.msra.mxu0 0.0
          %644 = vmatprep.subr.mxu0 0.0
          %645 = vmatpush1.msra.mxu0 0.0
          %646 = vmatprep.mubr.f32.mxu0 0.0
          %647 = vmatmul.mubr.f32.gmra.mrb[0].mxu0 %v576
          %v648 = vpop.f32.mrb[0].mxu0
          %v649 = vadd.f32 0.0, %v648
          %v650 = vpop.f32.mrb[0].mxu0
          %651 = vdwg.mxu0
          %v652 = vsel %vm501, %v564, 0
          %v655 = vsel %vm578, %v513, 0
          %657 = vmatprep.subr.mxu0 0.0
          %658 = vmatpush1.msra.mxu0 %v512
          %659 = vmatprep.subr.mxu0 0.0
          %660 = vmatpush1.msra.mxu0 %v655
          %661 = vmatprep.subr.mxu0 0.0
          %662 = vmatpush1.msra.mxu0 0.0
          %663 = vmatprep.subr.mxu0 0.0
          %664 = vmatpush1.msra.mxu0 0.0
          %665 = vmatprep.subr.mxu0 0.0
          %666 = vmatpush1.msra.mxu0 0.0
          %667 = vmatprep.subr.mxu0 0.0
          %668 = vmatpush1.msra.mxu0 0.0
          %669 = vmatprep.subr.mxu0 0.0
          %670 = vmatpush1.msra.mxu0 0.0
          %671 = vmatprep.subr.mxu0 0.0
          %672 = vmatpush1.msra.mxu0 0.0
          %673 = vmatprep.subr.mxu0 0.0
          %674 = vmatpush1.msra.mxu0 0.0
          %675 = vmatprep.subr.mxu0 0.0
          %676 = vmatpush1.msra.mxu0 0.0
          %677 = vmatprep.subr.mxu0 0.0
          %678 = vmatpush1.msra.mxu0 0.0
          %679 = vmatprep.subr.mxu0 0.0
          %680 = vmatpush1.msra.mxu0 0.0
          %681 = vmatprep.subr.mxu0 0.0
          %682 = vmatpush1.msra.mxu0 0.0
          %683 = vmatprep.subr.mxu0 0.0
          %684 = vmatpush1.msra.mxu0 0.0
          %685 = vmatprep.subr.mxu0 0.0
          %686 = vmatpush1.msra.mxu0 0.0
          %687 = vmatprep.subr.mxu0 0.0
          %688 = vmatpush1.msra.mxu0 0.0
          %689 = vmatprep.subr.mxu0 0.0
          %690 = vmatpush1.msra.mxu0 0.0
          %691 = vmatprep.subr.mxu0 0.0
          %692 = vmatpush1.msra.mxu0 0.0
          %693 = vmatprep.subr.mxu0 0.0
          %694 = vmatpush1.msra.mxu0 0.0
          %695 = vmatprep.subr.mxu0 0.0
          %696 = vmatpush1.msra.mxu0 0.0
          %697 = vmatprep.subr.mxu0 0.0
          %698 = vmatpush1.msra.mxu0 0.0
          %699 = vmatprep.subr.mxu0 0.0
          %700 = vmatpush1.msra.mxu0 0.0
          %701 = vmatprep.subr.mxu0 0.0
          %702 = vmatpush1.msra.mxu0 0.0
          %703 = vmatprep.subr.mxu0 0.0
          %704 = vmatpush1.msra.mxu0 0.0
          %705 = vmatprep.subr.mxu0 0.0
          %706 = vmatpush1.msra.mxu0 0.0
          %707 = vmatprep.subr.mxu0 0.0
          %708 = vmatpush1.msra.mxu0 0.0
          %709 = vmatprep.subr.mxu0 0.0
          %710 = vmatpush1.msra.mxu0 0.0
          %711 = vmatprep.subr.mxu0 0.0
          %712 = vmatpush1.msra.mxu0 0.0
          %713 = vmatprep.subr.mxu0 0.0
          %714 = vmatpush1.msra.mxu0 0.0
          %715 = vmatprep.subr.mxu0 0.0
          %716 = vmatpush1.msra.mxu0 0.0
          %717 = vmatprep.subr.mxu0 0.0
          %718 = vmatpush1.msra.mxu0 0.0
          %719 = vmatprep.subr.mxu0 0.0
          %720 = vmatpush1.msra.mxu0 0.0
          %721 = vmatprep.mubr.f32.mxu0 0.0
          %722 = vmatmul.mubr.f32.gmra.mrb[0].mxu0 %v652
          %v723 = vpop.f32.mrb[0].mxu0
          %v724 = vadd.f32 0.0, %v723
          %v725 = vpop.f32.mrb[0].mxu0
          %726 = vdwg.mxu0
          %v727 = vsel %vm501, %v572, 0
          %v730 = vsel %vm578, %v515, 0
          %732 = vmatprep.subr.mxu0 0.0
          %733 = vmatpush1.msra.mxu0 %v514
          %734 = vmatprep.subr.mxu0 0.0
          %735 = vmatpush1.msra.mxu0 %v730
          %736 = vmatprep.subr.mxu0 0.0
          %737 = vmatpush1.msra.mxu0 0.0
          %738 = vmatprep.subr.mxu0 0.0
          %739 = vmatpush1.msra.mxu0 0.0
          %740 = vmatprep.subr.mxu0 0.0
          %741 = vmatpush1.msra.mxu0 0.0
          %742 = vmatprep.subr.mxu0 0.0
          %743 = vmatpush1.msra.mxu0 0.0
          %744 = vmatprep.subr.mxu0 0.0
          %745 = vmatpush1.msra.mxu0 0.0
          %746 = vmatprep.subr.mxu0 0.0
          %747 = vmatpush1.msra.mxu0 0.0
          %748 = vmatprep.subr.mxu0 0.0
          %749 = vmatpush1.msra.mxu0 0.0
          %750 = vmatprep.subr.mxu0 0.0
          %751 = vmatpush1.msra.mxu0 0.0
          %752 = vmatprep.subr.mxu0 0.0
          %753 = vmatpush1.msra.mxu0 0.0
          %754 = vmatprep.subr.mxu0 0.0
          %755 = vmatpush1.msra.mxu0 0.0
          %756 = vmatprep.subr.mxu0 0.0
          %757 = vmatpush1.msra.mxu0 0.0
          %758 = vmatprep.subr.mxu0 0.0
          %759 = vmatpush1.msra.mxu0 0.0
          %760 = vmatprep.subr.mxu0 0.0
          %761 = vmatpush1.msra.mxu0 0.0
          %762 = vmatprep.subr.mxu0 0.0
          %763 = vmatpush1.msra.mxu0 0.0
          %764 = vmatprep.subr.mxu0 0.0
          %765 = vmatpush1.msra.mxu0 0.0
          %766 = vmatprep.subr.mxu0 0.0
          %767 = vmatpush1.msra.mxu0 0.0
          %768 = vmatprep.subr.mxu0 0.0
          %769 = vmatpush1.msra.mxu0 0.0
          %770 = vmatprep.subr.mxu0 0.0
          %771 = vmatpush1.msra.mxu0 0.0
          %772 = vmatprep.subr.mxu0 0.0
          %773 = vmatpush1.msra.mxu0 0.0
          %774 = vmatprep.subr.mxu0 0.0
          %775 = vmatpush1.msra.mxu0 0.0
          %776 = vmatprep.subr.mxu0 0.0
          %777 = vmatpush1.msra.mxu0 0.0
          %778 = vmatprep.subr.mxu0 0.0
          %779 = vmatpush1.msra.mxu0 0.0
          %780 = vmatprep.subr.mxu0 0.0
          %781 = vmatpush1.msra.mxu0 0.0
          %782 = vmatprep.subr.mxu0 0.0
          %783 = vmatpush1.msra.mxu0 0.0
          %784 = vmatprep.subr.mxu0 0.0
          %785 = vmatpush1.msra.mxu0 0.0
          %786 = vmatprep.subr.mxu0 0.0
          %787 = vmatpush1.msra.mxu0 0.0
          %788 = vmatprep.subr.mxu0 0.0
          %789 = vmatpush1.msra.mxu0 0.0
          %790 = vmatprep.subr.mxu0 0.0
          %791 = vmatpush1.msra.mxu0 0.0
          %792 = vmatprep.subr.mxu0 0.0
          %793 = vmatpush1.msra.mxu0 0.0
          %794 = vmatprep.subr.mxu0 0.0
          %795 = vmatpush1.msra.mxu0 0.0
          %796 = vmatprep.mubr.f32.mxu0 0.0
          %797 = vmatmul.mubr.f32.gmra.mrb[0].mxu0 %v727
          %v798 = vpop.f32.mrb[0].mxu0
          %v799 = vadd.f32 0.0, %v798
          %v800 = vpop.f32.mrb[0].mxu0
          %801 = vdwg.mxu0
          %v802 = vsel %vm501, %v574, 0
          %v805 = vsel %vm578, %v517, 0
          %807 = vmatprep.subr.mxu0 0.0
          %808 = vmatpush1.msra.mxu0 %v516
          %809 = vmatprep.subr.mxu0 0.0
          %810 = vmatpush1.msra.mxu0 %v805
          %811 = vmatprep.subr.mxu0 0.0
          %812 = vmatpush1.msra.mxu0 0.0
          %813 = vmatprep.subr.mxu0 0.0
          %814 = vmatpush1.msra.mxu0 0.0
          %815 = vmatprep.subr.mxu0 0.0
          %816 = vmatpush1.msra.mxu0 0.0
          %817 = vmatprep.subr.mxu0 0.0
          %818 = vmatpush1.msra.mxu0 0.0
          %819 = vmatprep.subr.mxu0 0.0
          %820 = vmatpush1.msra.mxu0 0.0
          %821 = vmatprep.subr.mxu0 0.0
          %822 = vmatpush1.msra.mxu0 0.0
          %823 = vmatprep.subr.mxu0 0.0
          %824 = vmatpush1.msra.mxu0 0.0
          %825 = vmatprep.subr.mxu0 0.0
          %826 = vmatpush1.msra.mxu0 0.0
          %827 = vmatprep.subr.mxu0 0.0
          %828 = vmatpush1.msra.mxu0 0.0
          %829 = vmatprep.subr.mxu0 0.0
          %830 = vmatpush1.msra.mxu0 0.0
          %831 = vmatprep.subr.mxu0 0.0
          %832 = vmatpush1.msra.mxu0 0.0
          %833 = vmatprep.subr.mxu0 0.0
          %834 = vmatpush1.msra.mxu0 0.0
          %835 = vmatprep.subr.mxu0 0.0
          %836 = vmatpush1.msra.mxu0 0.0
          %837 = vmatprep.subr.mxu0 0.0
          %838 = vmatpush1.msra.mxu0 0.0
          %839 = vmatprep.subr.mxu0 0.0
          %840 = vmatpush1.msra.mxu0 0.0
          %841 = vmatprep.subr.mxu0 0.0
          %842 = vmatpush1.msra.mxu0 0.0
          %843 = vmatprep.subr.mxu0 0.0
          %844 = vmatpush1.msra.mxu0 0.0
          %845 = vmatprep.subr.mxu0 0.0
          %846 = vmatpush1.msra.mxu0 0.0
          %847 = vmatprep.subr.mxu0 0.0
          %848 = vmatpush1.msra.mxu0 0.0
          %849 = vmatprep.subr.mxu0 0.0
          %850 = vmatpush1.msra.mxu0 0.0
          %851 = vmatprep.subr.mxu0 0.0
          %852 = vmatpush1.msra.mxu0 0.0
          %853 = vmatprep.subr.mxu0 0.0
          %854 = vmatpush1.msra.mxu0 0.0
          %855 = vmatprep.subr.mxu0 0.0
          %856 = vmatpush1.msra.mxu0 0.0
          %857 = vmatprep.subr.mxu0 0.0
          %858 = vmatpush1.msra.mxu0 0.0
          %859 = vmatprep.subr.mxu0 0.0
          %860 = vmatpush1.msra.mxu0 0.0
          %861 = vmatprep.subr.mxu0 0.0
          %862 = vmatpush1.msra.mxu0 0.0
          %863 = vmatprep.subr.mxu0 0.0
          %864 = vmatpush1.msra.mxu0 0.0
          %865 = vmatprep.subr.mxu0 0.0
          %866 = vmatpush1.msra.mxu0 0.0
          %867 = vmatprep.subr.mxu0 0.0
          %868 = vmatpush1.msra.mxu0 0.0
          %869 = vmatprep.subr.mxu0 0.0
          %870 = vmatpush1.msra.mxu0 0.0
          %871 = vmatprep.mubr.f32.mxu0 0.0
          %872 = vmatmul.mubr.f32.gmra.mrb[0].mxu0 %v802
          %v873 = vpop.f32.mrb[0].mxu0
          %v874 = vadd.f32 0.0, %v873
          %v875 = vpop.f32.mrb[0].mxu0
          %876 = vdwg.mxu0
          %v877 = vsel %vm501, %v557, 0
          %v880 = vsel %vm578, %v519, 0
          %882 = vmatprep.subr.mxu0 0.0
          %883 = vmatpush1.msra.mxu0 %v518
          %884 = vmatprep.subr.mxu0 0.0
          %885 = vmatpush1.msra.mxu0 %v880
          %886 = vmatprep.subr.mxu0 0.0
          %887 = vmatpush1.msra.mxu0 0.0
          %888 = vmatprep.subr.mxu0 0.0
          %889 = vmatpush1.msra.mxu0 0.0
          %890 = vmatprep.subr.mxu0 0.0
          %891 = vmatpush1.msra.mxu0 0.0
          %892 = vmatprep.subr.mxu0 0.0
          %893 = vmatpush1.msra.mxu0 0.0
          %894 = vmatprep.subr.mxu0 0.0
          %895 = vmatpush1.msra.mxu0 0.0
          %896 = vmatprep.subr.mxu0 0.0
          %897 = vmatpush1.msra.mxu0 0.0
          %898 = vmatprep.subr.mxu0 0.0
          %899 = vmatpush1.msra.mxu0 0.0
          %900 = vmatprep.subr.mxu0 0.0
          %901 = vmatpush1.msra.mxu0 0.0
          %902 = vmatprep.subr.mxu0 0.0
          %903 = vmatpush1.msra.mxu0 0.0
          %904 = vmatprep.subr.mxu0 0.0
          %905 = vmatpush1.msra.mxu0 0.0
          %906 = vmatprep.subr.mxu0 0.0
          %907 = vmatpush1.msra.mxu0 0.0
          %908 = vmatprep.subr.mxu0 0.0
          %909 = vmatpush1.msra.mxu0 0.0
          %910 = vmatprep.subr.mxu0 0.0
          %911 = vmatpush1.msra.mxu0 0.0
          %912 = vmatprep.subr.mxu0 0.0
          %913 = vmatpush1.msra.mxu0 0.0
          %914 = vmatprep.subr.mxu0 0.0
          %915 = vmatpush1.msra.mxu0 0.0
          %916 = vmatprep.subr.mxu0 0.0
          %917 = vmatpush1.msra.mxu0 0.0
          %918 = vmatprep.subr.mxu0 0.0
          %919 = vmatpush1.msra.mxu0 0.0
          %920 = vmatprep.subr.mxu0 0.0
          %921 = vmatpush1.msra.mxu0 0.0
          %922 = vmatprep.subr.mxu0 0.0
          %923 = vmatpush1.msra.mxu0 0.0
          %924 = vmatprep.subr.mxu0 0.0
          %925 = vmatpush1.msra.mxu0 0.0
          %926 = vmatprep.subr.mxu0 0.0
          %927 = vmatpush1.msra.mxu0 0.0
          %928 = vmatprep.subr.mxu0 0.0
          %929 = vmatpush1.msra.mxu0 0.0
          %930 = vmatprep.subr.mxu0 0.0
          %931 = vmatpush1.msra.mxu0 0.0
          %932 = vmatprep.subr.mxu0 0.0
          %933 = vmatpush1.msra.mxu0 0.0
          %934 = vmatprep.subr.mxu0 0.0
          %935 = vmatpush1.msra.mxu0 0.0
          %936 = vmatprep.subr.mxu0 0.0
          %937 = vmatpush1.msra.mxu0 0.0
          %938 = vmatprep.subr.mxu0 0.0
          %939 = vmatpush1.msra.mxu0 0.0
          %940 = vmatprep.subr.mxu0 0.0
          %941 = vmatpush1.msra.mxu0 0.0
          %942 = vmatprep.subr.mxu0 0.0
          %943 = vmatpush1.msra.mxu0 0.0
          %944 = vmatprep.subr.mxu0 0.0
          %945 = vmatpush1.msra.mxu0 0.0
          %946 = vmatprep.mubr.f32.mxu0 0.0
          %947 = vmatmul.mubr.f32.gmra.mrb[0].mxu0 %v877
          %v948 = vpop.f32.mrb[0].mxu0
          %v949 = vadd.f32 0.0, %v948
          %v950 = vpop.f32.mrb[0].mxu0
          %951 = vdwg.mxu0
          %v952 = vsel %vm501, %v571, 0
          %v955 = vsel %vm578, %v521, 0
          %957 = vmatprep.subr.mxu0 0.0
          %958 = vmatpush1.msra.mxu0 %v520
          %959 = vmatprep.subr.mxu0 0.0
          %960 = vmatpush1.msra.mxu0 %v955
          %961 = vmatprep.subr.mxu0 0.0
          %962 = vmatpush1.msra.mxu0 0.0
          %963 = vmatprep.subr.mxu0 0.0
          %964 = vmatpush1.msra.mxu0 0.0
          %965 = vmatprep.subr.mxu0 0.0
          %966 = vmatpush1.msra.mxu0 0.0
          %967 = vmatprep.subr.mxu0 0.0
          %968 = vmatpush1.msra.mxu0 0.0
          %969 = vmatprep.subr.mxu0 0.0
          %970 = vmatpush1.msra.mxu0 0.0
          %971 = vmatprep.subr.mxu0 0.0
          %972 = vmatpush1.msra.mxu0 0.0
          %973 = vmatprep.subr.mxu0 0.0
          %974 = vmatpush1.msra.mxu0 0.0
          %975 = vmatprep.subr.mxu0 0.0
          %976 = vmatpush1.msra.mxu0 0.0
          %977 = vmatprep.subr.mxu0 0.0
          %978 = vmatpush1.msra.mxu0 0.0
          %979 = vmatprep.subr.mxu0 0.0
          %980 = vmatpush1.msra.mxu0 0.0
          %981 = vmatprep.subr.mxu0 0.0
          %982 = vmatpush1.msra.mxu0 0.0
          %983 = vmatprep.subr.mxu0 0.0
          %984 = vmatpush1.msra.mxu0 0.0
          %985 = vmatprep.subr.mxu0 0.0
          %986 = vmatpush1.msra.mxu0 0.0
          %987 = vmatprep.subr.mxu0 0.0
          %988 = vmatpush1.msra.mxu0 0.0
          %989 = vmatprep.subr.mxu0 0.0
          %990 = vmatpush1.msra.mxu0 0.0
          %991 = vmatprep.subr.mxu0 0.0
          %992 = vmatpush1.msra.mxu0 0.0
          %993 = vmatprep.subr.mxu0 0.0
          %994 = vmatpush1.msra.mxu0 0.0
          %995 = vmatprep.subr.mxu0 0.0
          %996 = vmatpush1.msra.mxu0 0.0
          %997 = vmatprep.subr.mxu0 0.0
          %998 = vmatpush1.msra.mxu0 0.0
          %999 = vmatprep.subr.mxu0 0.0
          %1000 = vmatpush1.msra.mxu0 0.0
          %1001 = vmatprep.subr.mxu0 0.0
          %1002 = vmatpush1.msra.mxu0 0.0
          %1003 = vmatprep.subr.mxu0 0.0
          %1004 = vmatpush1.msra.mxu0 0.0
          %1005 = vmatprep.subr.mxu0 0.0
          %1006 = vmatpush1.msra.mxu0 0.0
          %1007 = vmatprep.subr.mxu0 0.0
          %1008 = vmatpush1.msra.mxu0 0.0
          %1009 = vmatprep.subr.mxu0 0.0
          %1010 = vmatpush1.msra.mxu0 0.0
          %1011 = vmatprep.subr.mxu0 0.0
          %1012 = vmatpush1.msra.mxu0 0.0
          %1013 = vmatprep.subr.mxu0 0.0
          %1014 = vmatpush1.msra.mxu0 0.0
          %1015 = vmatprep.subr.mxu0 0.0
          %1016 = vmatpush1.msra.mxu0 0.0
          %1017 = vmatprep.subr.mxu0 0.0
          %1018 = vmatpush1.msra.mxu0 0.0
          %1019 = vmatprep.subr.mxu0 0.0
          %1020 = vmatpush1.msra.mxu0 0.0
          %1021 = vmatprep.mubr.f32.mxu0 0.0
          %1022 = vmatmul.mubr.f32.gmra.mrb[0].mxu0 %v952
          %v1023 = vpop.f32.mrb[0].mxu0
          %v1024 = vadd.f32 0.0, %v1023
          %v1025 = vpop.f32.mrb[0].mxu0
          %1026 = vdwg.mxu0
          %v1027 = vsel %vm501, %v573, 0
          %v1030 = vsel %vm578, %v523, 0
          %1032 = vmatprep.subr.mxu0 0.0
          %1033 = vmatpush1.msra.mxu0 %v522
          %1034 = vmatprep.subr.mxu0 0.0
          %1035 = vmatpush1.msra.mxu0 %v1030
          %1036 = vmatprep.subr.mxu0 0.0
          %1037 = vmatpush1.msra.mxu0 0.0
          %1038 = vmatprep.subr.mxu0 0.0
          %1039 = vmatpush1.msra.mxu0 0.0
          %1040 = vmatprep.subr.mxu0 0.0
          %1041 = vmatpush1.msra.mxu0 0.0
          %1042 = vmatprep.subr.mxu0 0.0
          %1043 = vmatpush1.msra.mxu0 0.0
          %1044 = vmatprep.subr.mxu0 0.0
          %1045 = vmatpush1.msra.mxu0 0.0
          %1046 = vmatprep.subr.mxu0 0.0
          %1047 = vmatpush1.msra.mxu0 0.0
          %1048 = vmatprep.subr.mxu0 0.0
          %1049 = vmatpush1.msra.mxu0 0.0
          %1050 = vmatprep.subr.mxu0 0.0
          %1051 = vmatpush1.msra.mxu0 0.0
          %1052 = vmatprep.subr.mxu0 0.0
          %1053 = vmatpush1.msra.mxu0 0.0
          %1054 = vmatprep.subr.mxu0 0.0
          %1055 = vmatpush1.msra.mxu0 0.0
          %1056 = vmatprep.subr.mxu0 0.0
          %1057 = vmatpush1.msra.mxu0 0.0
          %1058 = vmatprep.subr.mxu0 0.0
          %1059 = vmatpush1.msra.mxu0 0.0
          %1060 = vmatprep.subr.mxu0 0.0
          %1061 = vmatpush1.msra.mxu0 0.0
          %1062 = vmatprep.subr.mxu0 0.0
          %1063 = vmatpush1.msra.mxu0 0.0
          %1064 = vmatprep.subr.mxu0 0.0
          %1065 = vmatpush1.msra.mxu0 0.0
          %1066 = vmatprep.subr.mxu0 0.0
          %1067 = vmatpush1.msra.mxu0 0.0
          %1068 = vmatprep.subr.mxu0 0.0
          %1069 = vmatpush1.msra.mxu0 0.0
          %1070 = vmatprep.subr.mxu0 0.0
          %1071 = vmatpush1.msra.mxu0 0.0
          %1072 = vmatprep.subr.mxu0 0.0
          %1073 = vmatpush1.msra.mxu0 0.0
          %1074 = vmatprep.subr.mxu0 0.0
          %1075 = vmatpush1.msra.mxu0 0.0
          %1076 = vmatprep.subr.mxu0 0.0
          %1077 = vmatpush1.msra.mxu0 0.0
          %1078 = vmatprep.subr.mxu0 0.0
          %1079 = vmatpush1.msra.mxu0 0.0
          %1080 = vmatprep.subr.mxu0 0.0
          %1081 = vmatpush1.msra.mxu0 0.0
          %1082 = vmatprep.subr.mxu0 0.0
          %1083 = vmatpush1.msra.mxu0 0.0
          %1084 = vmatprep.subr.mxu0 0.0
          %1085 = vmatpush1.msra.mxu0 0.0
          %1086 = vmatprep.subr.mxu0 0.0
          %1087 = vmatpush1.msra.mxu0 0.0
          %1088 = vmatprep.subr.mxu0 0.0
          %1089 = vmatpush1.msra.mxu0 0.0
          %1090 = vmatprep.subr.mxu0 0.0
          %1091 = vmatpush1.msra.mxu0 0.0
          %1092 = vmatprep.subr.mxu0 0.0
          %1093 = vmatpush1.msra.mxu0 0.0
          %1094 = vmatprep.subr.mxu0 0.0
          %1095 = vmatpush1.msra.mxu0 0.0
          %1096 = vmatprep.mubr.f32.mxu0 0.0
          %1097 = vmatmul.mubr.f32.gmra.mrb[0].mxu0 %v1027
          %v1098 = vpop.f32.mrb[0].mxu0
          %v1099 = vadd.f32 0.0, %v1098
          %v1100 = vpop.f32.mrb[0].mxu0
          %1101 = vdwg.mxu0
          %v1102 = vsel %vm501, %v575, 0
          %v1105 = vsel %vm578, %v525, 0
          %1107 = vmatprep.subr.mxu0 0.0
          %1108 = vmatpush1.msra.mxu0 %v524
          %1109 = vmatprep.subr.mxu0 0.0
          %1110 = vmatpush1.msra.mxu0 %v1105
          %1111 = vmatprep.subr.mxu0 0.0
          %1112 = vmatpush1.msra.mxu0 0.0
          %1113 = vmatprep.subr.mxu0 0.0
          %1114 = vmatpush1.msra.mxu0 0.0
          %1115 = vmatprep.subr.mxu0 0.0
          %1116 = vmatpush1.msra.mxu0 0.0
          %1117 = vmatprep.subr.mxu0 0.0
          %1118 = vmatpush1.msra.mxu0 0.0
          %1119 = vmatprep.subr.mxu0 0.0
          %1120 = vmatpush1.msra.mxu0 0.0
          %1121 = vmatprep.subr.mxu0 0.0
          %1122 = vmatpush1.msra.mxu0 0.0
          %1123 = vmatprep.subr.mxu0 0.0
          %1124 = vmatpush1.msra.mxu0 0.0
          %1125 = vmatprep.subr.mxu0 0.0
          %1126 = vmatpush1.msra.mxu0 0.0
          %1127 = vmatprep.subr.mxu0 0.0
          %1128 = vmatpush1.msra.mxu0 0.0
          %1129 = vmatprep.subr.mxu0 0.0
          %1130 = vmatpush1.msra.mxu0 0.0
          %1131 = vmatprep.subr.mxu0 0.0
          %1132 = vmatpush1.msra.mxu0 0.0
          %1133 = vmatprep.subr.mxu0 0.0
          %1134 = vmatpush1.msra.mxu0 0.0
          %1135 = vmatprep.subr.mxu0 0.0
          %1136 = vmatpush1.msra.mxu0 0.0
          %1137 = vmatprep.subr.mxu0 0.0
          %1138 = vmatpush1.msra.mxu0 0.0
          %1139 = vmatprep.subr.mxu0 0.0
          %1140 = vmatpush1.msra.mxu0 0.0
          %1141 = vmatprep.subr.mxu0 0.0
          %1142 = vmatpush1.msra.mxu0 0.0
          %1143 = vmatprep.subr.mxu0 0.0
          %1144 = vmatpush1.msra.mxu0 0.0
          %1145 = vmatprep.subr.mxu0 0.0
          %1146 = vmatpush1.msra.mxu0 0.0
          %1147 = vmatprep.subr.mxu0 0.0
          %1148 = vmatpush1.msra.mxu0 0.0
          %1149 = vmatprep.subr.mxu0 0.0
          %1150 = vmatpush1.msra.mxu0 0.0
          %1151 = vmatprep.subr.mxu0 0.0
          %1152 = vmatpush1.msra.mxu0 0.0
          %1153 = vmatprep.subr.mxu0 0.0
          %1154 = vmatpush1.msra.mxu0 0.0
          %1155 = vmatprep.subr.mxu0 0.0
          %1156 = vmatpush1.msra.mxu0 0.0
          %1157 = vmatprep.subr.mxu0 0.0
          %1158 = vmatpush1.msra.mxu0 0.0
          %1159 = vmatprep.subr.mxu0 0.0
          %1160 = vmatpush1.msra.mxu0 0.0
          %1161 = vmatprep.subr.mxu0 0.0
          %1162 = vmatpush1.msra.mxu0 0.0
          %1163 = vmatprep.subr.mxu0 0.0
          %1164 = vmatpush1.msra.mxu0 0.0
          %1165 = vmatprep.subr.mxu0 0.0
          %1166 = vmatpush1.msra.mxu0 0.0
          %1167 = vmatprep.subr.mxu0 0.0
          %1168 = vmatpush1.msra.mxu0 0.0
          %1169 = vmatprep.subr.mxu0 0.0
          %1170 = vmatpush1.msra.mxu0 0.0
          %1171 = vmatprep.mubr.f32.mxu0 0.0
          %1172 = vmatmul.mubr.f32.gmra.mrb[0].mxu0 %v1102
          %v1173 = vpop.f32.mrb[0].mxu0
          %v1174 = vadd.f32 0.0, %v1173
          %v1175 = vpop.f32.mrb[0].mxu0
          %1176 = vdwg.mxu0
          %v1185 = vrot.slane %v724, 7
          %vm1186 = vcmask 1041409
          %v1187 = vsel %vm1186, %v1185, %v649
          %v1188 = vrot.slane %v799, 6
          %vm1189 = vcmask 1042434
          %v1190 = vsel %vm1189, %v1188, %v1187
          %v1191 = vrot.slane %v874, 5
          %vm1192 = vcmask 1043459
          %v1193 = vsel %vm1192, %v1191, %v1190
          %v1194 = vrot.slane %v949, 4
          %vm1195 = vcmask 1044484
          %v1196 = vsel %vm1195, %v1194, %v1193
          %v1197 = vrot.slane %v1024, 3
          %vm1198 = vcmask 1045509
          %v1199 = vsel %vm1198, %v1197, %v1196
          %v1200 = vrot.slane %v1099, 2
          %vm1201 = vcmask 1046534
          %v1202 = vsel %vm1201, %v1200, %v1199
          %v1203 = vrot.slane %v1174, 1
          %vm1204 = vcmask 1047559
          %v1205 = vsel %vm1204, %v1203, %v1202
          %1207 = vst [vmem:[%s209] sm:$0xff] %v1205
        $region44: #{tpu_custom_call.1} parent=31 // pred_fallthru
          _
        %s1208 = sand.u32 %s114, 1
        %s1209 = scalar_lea.sflag [#allocation6], %s1208
        %s1210 = sand.u32 %s114, 1
        %s1211 = smul.addr %s1210, 8
        %s1212 = scalar_lea.vmem [#allocation8], %s1211
        // Predicated region
        $region49: #{tpu_custom_call.1} parent=31 // pred_check
          %p1213 = pneg %p124
        $region50: #{tpu_custom_call.1} parent=31 // pred_check_branch
          %1215 = sbr.rel (%p1213) target = $region52
        $region51: #{tpu_custom_call.1} parent=31 // pred_region
          %s1216 = smul.u32 %s22, %s23
          %s1218 = ssub.s32 128, 128
          %1219 = vsyncadd %s1209, %s1218
          %s1220 = smul.addr %s1216, 128
          %s1221 = scalar_lea.hbm %s3, %s1220
          %s1223 = sshll.u32 %s1212, 4
          %s1224 = int_to_ptr.vmem [resolvable:$true] %s1223
          %1226 = dma.vmem_to_hbm [thread:$0]  %s1224, 128, %s1221, %s1209
        $region52: #{tpu_custom_call.1} parent=31 // pred_fallthru
          _
      $region32: #{tpu_custom_call.1} parent=5 // pred_fallthru
        _
      %p1227 = scmp.le.s32.totalorder 2, %s13
      // Predicated region
      $region53: #{tpu_custom_call.1} parent=5 // pred_check
        %p1228 = pneg %p1227
      $region54: #{tpu_custom_call.1} parent=5 // pred_check_branch
        %1230 = sbr.rel (%p1228) target = $region56
      $region55: #{tpu_custom_call.1} parent=5 // pred_region
        %s1231 = ssub.s32 %s13, 2
        // Predicated region
        $region57: #{tpu_custom_call.1} parent=55 // pred_check
          %p1232 = pneg %p130
        $region58: #{tpu_custom_call.1} parent=55 // pred_check_branch
          %1234 = sbr.rel (%p1232) target = $region60
        $region59: #{tpu_custom_call.1} parent=55 // pred_region
          %s1235 = sand.u32 %s115, 1
          %s1236 = scalar_lea.sflag [#allocation6], %s1235
          %s1237 = sand.u32 %s115, 1
          %s1238 = smul.addr %s1237, 8
          %s1239 = scalar_lea.vmem [#allocation8], %s1238
          %1240 = dma.done %s1236, 128
        $region60: #{tpu_custom_call.1} parent=55 // pred_fallthru
          _
      $region56: #{tpu_custom_call.1} parent=5 // pred_fallthru
        _
    $region6: #{tpu_custom_call.1} parent=1 // loop_footer
      %s17 = sadd.s32 1, %s13
    $region7: #{tpu_custom_call.1} parent=1 // loop_footer_branch
      %12 = sbr.rel target = $region3
    $region8: #{tpu_custom_call.1} parent=1 // loop_exit
      _
    %1241 = vsyncpa [#allocation6], 1
    %s1242 = scalar_lea.sflag [#allocation6], 1
    %1243 = vsyncpa %s1242, 1
    %1244 = vsyncpa [#allocation7], 1
    %s1245 = scalar_lea.sflag [#allocation7], 1
    %1246 = vsyncpa %s1245, 1

</llo_original>
